<compile_context>
chip_gen: v7x
topology: tpu7x:2x2x1
jax: 0.10.0
libtpu: 0.0.40
codegen_flags: <defaults>
</compile_context>

<pallas_src>
import math

import jax
import jax.numpy as jnp
from jax.experimental import pallas as pl
from jax.experimental.pallas import tpu as pltpu

_FALLBACK_LANE = 128  # lane width for the (rare) pad fallback path


def _gelu_kernel(x_ref, o_ref):
    # Compute in f32 regardless of input dtype (parity with PyTorch half
    # GELU, and avoids per-op bf16->f32 converts on v5e's VPU/EUP).
    x = x_ref[...].astype(jnp.float32)
    c = jnp.float32(math.sqrt(2.0 / math.pi))
    k = jnp.float32(0.044715)

    x2 = x * x                               # reuse x^2 (VALU trim)
    inner = c * x * (1.0 + k * x2)           # == c * (x + 0.044715 * x^3)
    y = (0.5 * x) * (1.0 + jnp.tanh(inner))  # tanh -> EUP slot
    o_ref[...] = y.astype(o_ref.dtype)


def _target_block_bytes():
    """Block size in bytes: in+out double-buffered must fit scoped VMEM."""
    try:
        kind = jax.devices()[0].device_kind.lower()
    except Exception:
        kind = ""
    if "v5 lite" in kind or "v5e" in kind or "v5lite" in kind:
        # v5e scoped-VMEM default is 16 MiB: 4 x 3 MiB = 12 MiB with headroom.
        return 3 << 20
    # v6e / v7x scoped-VMEM default is 32 MiB: 4 x 4 MiB = 16 MiB.
    return 4 << 20


def gelu_pallas(x):
    """GELU (tanh approx), matching the PyTorch module's forward exactly."""
    orig_shape = x.shape
    total = x.size
    if total == 0:
        return x
    itemsize = jnp.dtype(x.dtype).itemsize

    # ---- choose a lane-dense 2-D view ------------------------------------
    if orig_shape and orig_shape[-1] % 128 == 0:
        # Fast path: use the tensor's own last dim as the lane dim; just
        # collapse leading dims.  No pad, no trailing slice.
        lane = orig_shape[-1]
        rows = total // lane
        x2d = x.reshape(rows, lane)
        needs_unpad = False
    else:
        # Fallback: flatten and pad the tail up to 128 lanes.  GELU(0) = 0,
        # so padding with zeros is benign.
        lane = _FALLBACK_LANE
        rows = pl.cdiv(total, lane)
        padded_total = rows * lane
        flat = x.reshape(-1)
        if padded_total != total:
            flat = jnp.pad(flat, (0, padded_total - total))
        x2d = flat.reshape(rows, lane)
        needs_unpad = padded_total != total

    # ---- size the row block by bytes (multiple of 8 sublanes) -------------
    row_bytes = lane * itemsize
    block_rows = max(8, (_target_block_bytes() // row_bytes) // 8 * 8)
    if rows <= block_rows:
        # Single block covering the whole array (legal even if rows % 8 != 0,
        # because the block equals the full array dim).
        block_rows = rows
    # else: block_rows is a multiple of 8; the last (ragged) block is masked
    # by Pallas, so rows need not divide evenly.

    grid = (pl.cdiv(rows, block_rows),)

    moved = rows * lane * itemsize  # bytes the kernel actually streams
    cost = pl.CostEstimate(
        flops=8 * rows * lane,
        transcendentals=rows * lane,
        bytes_accessed=2 * moved,
    )

    out2d = pl.pallas_call(
        _gelu_kernel,
        out_shape=jax.ShapeDtypeStruct(x2d.shape, x2d.dtype),
        grid_spec=pl.GridSpec(
            grid=grid,
            in_specs=[pl.BlockSpec((block_rows, lane), lambda i: (i, 0))],
            out_specs=pl.BlockSpec((block_rows, lane), lambda i: (i, 0)),
        ),
        compiler_params=pltpu.CompilerParams(
            dimension_semantics=("parallel",),
        ),
        cost_estimate=cost,
    )(x2d)

    if needs_unpad:
        return out2d.reshape(-1)[:total].reshape(orig_shape)
    return out2d.reshape(orig_shape)


def _gelu_ref(x):
    c = math.sqrt(2.0 / math.pi)
    xf = x.astype(jnp.float32)
    y = 0.5 * xf * (1.0 + jnp.tanh(c * (xf + 0.044715 * xf**3)))
    return y.astype(x.dtype)


if __name__ == "__main__":
    key = jax.random.PRNGKey(0)

    # Fast path: last dim is a multiple of 128 (typical GELU input in the
    # feed-forward block), small shape: batch=2, seq=8, hidden=256.
    x = jax.random.normal(key, (2, 8, 256), dtype=jnp.float32)
    y = gelu_pallas(x)
    jax.block_until_ready(y)
    assert jnp.allclose(y, _gelu_ref(x), atol=1e-6, rtol=1e-6), \
        "mismatch vs reference (fast path)"

    # Fallback path: ragged last dim (32), exercises the pad/mask branch.
    x2 = jax.random.normal(jax.random.PRNGKey(1), (2, 8, 32), dtype=jnp.float32)
    y2 = gelu_pallas(x2)
    jax.block_until_ready(y2)
    assert jnp.allclose(y2, _gelu_ref(x2), atol=1e-6, rtol=1e-6), \
        "mismatch vs reference (fallback path)"

    print("KERNEL_OK")
</pallas_src>

<mosaic_0001>
module attributes {stable_mosaic.version = 11 : i64} {
  func.func @_gelu_kernel(%arg0: i32, %arg1: memref<16x256xf32, #tpu.memory_space<vmem>>, %arg2: memref<16x256xf32, #tpu.memory_space<vmem>>) attributes {dimension_semantics = [#tpu.dimension_semantics<parallel>], iteration_bounds = array<i64: 1>, scalar_prefetch = 0 : i64, scratch_operands = 0 : i64, tpu.core_type = #tpu.core_type<tc>, window_params = [{transform_indices = @transform_0, window_bounds = array<i64: 16, 256>}, {transform_indices = @transform_1, window_bounds = array<i64: 16, 256>}]} {
    %c0 = arith.constant 0 : index
    %c0_0 = arith.constant 0 : index
    %0 = vector.load %arg1[%c0, %c0_0] : memref<16x256xf32, #tpu.memory_space<vmem>>, vector<16x256xf32>
    %1 = arith.mulf %0, %0 : vector<16x256xf32>
    %cst = arith.constant 0.797884583 : f32
    %2 = vector.broadcast %cst : f32 to vector<16x256xf32>
    %3 = arith.mulf %2, %0 : vector<16x256xf32>
    %cst_1 = arith.constant 4.471500e-02 : f32
    %4 = vector.broadcast %cst_1 : f32 to vector<16x256xf32>
    %5 = arith.mulf %4, %1 : vector<16x256xf32>
    %cst_2 = arith.constant 1.000000e+00 : f32
    %6 = vector.broadcast %cst_2 : f32 to vector<16x256xf32>
    %7 = arith.addf %6, %5 : vector<16x256xf32>
    %8 = arith.mulf %3, %7 : vector<16x256xf32>
    %cst_3 = arith.constant 5.000000e-01 : f32
    %9 = vector.broadcast %cst_3 : f32 to vector<16x256xf32>
    %10 = arith.mulf %9, %0 : vector<16x256xf32>
    %11 = math.tanh %8 : vector<16x256xf32>
    %cst_4 = arith.constant 1.000000e+00 : f32
    %12 = vector.broadcast %cst_4 : f32 to vector<16x256xf32>
    %13 = arith.addf %12, %11 : vector<16x256xf32>
    %14 = arith.mulf %10, %13 : vector<16x256xf32>
    %c0_5 = arith.constant 0 : index
    %c0_6 = arith.constant 0 : index
    %15 = vector.load %arg2[%c0_5, %c0_6] : memref<16x256xf32, #tpu.memory_space<vmem>>, vector<16x256xf32>
    tpu.vector_store %arg2[%c0_5, %c0_6], %14 {strides = array<i32>} : memref<16x256xf32, #tpu.memory_space<vmem>>, vector<16x256xf32>,
    return
  }
  func.func @transform_0(%arg0: i32) -> (i32, i32) {
    %c0_i32 = arith.constant 0 : i32
    %c0_i32_0 = arith.constant 0 : i32
    return %arg0, %c0_i32 : i32, i32
  }
  func.func @transform_1(%arg0: i32) -> (i32, i32) {
    %c0_i32 = arith.constant 0 : i32
    %c0_i32_0 = arith.constant 0 : i32
    return %arg0, %c0_i32 : i32, i32
  }
}

</mosaic_0001>

<llo_original>
// kernel: tpu_custom_call.1
$region0: #{tpu_custom_call.1}
  #allocation0 [shape = 'u32[]', space=smem, size = 0x4, offset = 0x4, fixed_abs, tag = 'smem constant byte address 0x4 - core index']
  #allocation1 [shape = 'u32[144,128]{1,0:T(1,128)}', space=vmem, size = 0x12000, scoped, tag = 'internal scratch']
  %s0 = inlined_call_operand.hbm [shape: f32[16,256], index: 0, kind: input, shape index: {}]
  %s1 = inlined_call_operand.hbm [shape: f32[16,256], index: 1, kind: output, shape index: {}]
  %s2 = sld [smem:[#allocation0]]
  $region18: #{tpu_custom_call.1} parent=0
    _
  %s4 = ssub.s32 1, %s2
  %s5 = scalar_select 0, %s4, %s2
  $region1: #{tpu_custom_call.1} parent=0
    #allocation2 [shape = 'u8[16384]{0}', space=vmem, size = 0x4000, scoped, tag = 'input window, operand 0, single buffered']
    #allocation3 [shape = 's32[1]{0}', space=sflag, size = 0x4, scoped, tag = 'scoped memory for tpu_custom_call.1']
    #allocation4 [shape = 's32[1]{0}', space=sflag, size = 0x4, scoped, tag = 'scoped memory for tpu_custom_call.1']
    #allocation5 [shape = 'u8[16384]{0}', space=vmem, size = 0x4000, scoped, tag = 'output window, operand 0, single buffered']
    %6 = vsyncpa [#allocation3], 0
    %7 = vsyncpa [#allocation4], 0
    // Predicated region
    $region2: #{tpu_custom_call.1} parent=1 // pred_check
      _
    $region3: #{tpu_custom_call.1} parent=1 // pred_check_branch
      %9 = sbr.rel (0) target = $region5
    $region4: #{tpu_custom_call.1} parent=1 // pred_region
      %s11 = ssub.s32 512, 512
      %12 = vsyncadd [#allocation3], %s11
      %s13 = sshll.u32 [#allocation2], 4
      %s14 = int_to_ptr.vmem [resolvable:$true] %s13
      %19 = dma.hbm_to_vmem [thread:$0]  %s0, 512, %s14, [#allocation3], 256, 256, 16
    $region5: #{tpu_custom_call.1} parent=1 // pred_fallthru
      _
    // Predicated region
    $region6: #{tpu_custom_call.1} parent=1 // pred_check
      _
    $region7: #{tpu_custom_call.1} parent=1 // pred_check_branch
      %21 = sbr.rel (0) target = $region9
    $region8: #{tpu_custom_call.1} parent=1 // pred_region
      %22 = dma.done [#allocation3], 512
    $region9: #{tpu_custom_call.1} parent=1 // pred_fallthru
      _
    %v23 = vld [vmem:[#allocation2] sm:$0xff]
    %v24 = vld [vmem:[#allocation2 + $0x8] sm:$0xff]
    %v25 = vld [vmem:[#allocation2 + $0x10] sm:$0xff]
    %v26 = vld [vmem:[#allocation2 + $0x18] sm:$0xff]
    %v27 = vmul.f32 %v23, %v23
    %v28 = vmul.f32 %v24, %v24
    %v29 = vmul.f32 %v25, %v25
    %v30 = vmul.f32 %v26, %v26
    %v31 = vmul.f32 %v23, 0.7978846
    %v32 = vmul.f32 %v24, 0.7978846
    %v33 = vmul.f32 %v25, 0.7978846
    %v34 = vmul.f32 %v26, 0.7978846
    %v35 = vmul.f32 %v27, 0.044715
    %v36 = vmul.f32 %v28, 0.044715
    %v37 = vmul.f32 %v29, 0.044715
    %v38 = vmul.f32 %v30, 0.044715
    %v39 = vadd.f32 %v35, 1.0
    %v40 = vadd.f32 %v36, 1.0
    %v41 = vadd.f32 %v37, 1.0
    %v42 = vadd.f32 %v38, 1.0
    %v43 = vmul.f32 %v31, %v39
    %v44 = vmul.f32 %v32, %v40
    %v45 = vmul.f32 %v33, %v41
    %v46 = vmul.f32 %v34, %v42
    %v47 = vmul.f32 %v23, 0.5
    %v48 = vmul.f32 %v24, 0.5
    %v49 = vmul.f32 %v25, 0.5
    %v50 = vmul.f32 %v26, 0.5
    %v51 = vtanh.pop %v43
    %v52 = vtanh.pop %v44
    %v53 = vtanh.pop %v45
    %v54 = vtanh.pop %v46
    %v55 = vadd.f32 %v51, 1.0
    %v56 = vadd.f32 %v52, 1.0
    %v57 = vadd.f32 %v53, 1.0
    %v58 = vadd.f32 %v54, 1.0
    %v59 = vmul.f32 %v47, %v55
    %v60 = vmul.f32 %v48, %v56
    %v61 = vmul.f32 %v49, %v57
    %v62 = vmul.f32 %v50, %v58
    %63 = vst [vmem:[#allocation5] sm:$0xff] %v59
    %64 = vst [vmem:[#allocation5 + $0x8] sm:$0xff] %v60
    %65 = vst [vmem:[#allocation5 + $0x10] sm:$0xff] %v61
    %66 = vst [vmem:[#allocation5 + $0x18] sm:$0xff] %v62
    // Predicated region
    $region10: #{tpu_custom_call.1} parent=1 // pred_check
      _
    $region11: #{tpu_custom_call.1} parent=1 // pred_check_branch
      %68 = sbr.rel (0) target = $region13
    $region12: #{tpu_custom_call.1} parent=1 // pred_region
      %s70 = ssub.s32 512, 512
      %71 = vsyncadd [#allocation4], %s70
      %s72 = sshll.u32 [#allocation5], 4
      %s73 = int_to_ptr.vmem [resolvable:$true] %s72
      %78 = dma.vmem_to_hbm [thread:$0]  %s73, 512, %s1, [#allocation4], 256, 256, 16
    $region13: #{tpu_custom_call.1} parent=1 // pred_fallthru
      _
    // Predicated region
    $region14: #{tpu_custom_call.1} parent=1 // pred_check
      _
    $region15: #{tpu_custom_call.1} parent=1 // pred_check_branch
      %80 = sbr.rel (0) target = $region17
    $region16: #{tpu_custom_call.1} parent=1 // pred_region
      %81 = dma.done [#allocation4], 512
    $region17: #{tpu_custom_call.1} parent=1 // pred_fallthru
      _
    %82 = vsyncpa [#allocation3], 1
    %83 = vsyncpa [#allocation4], 1

</llo_original>
